<compile_context>
chip_gen: v5e
topology: v5e:2x2
jax: 0.10.0
libtpu: 0.0.40
codegen_flags: <defaults>
</compile_context>

<pallas_src>
import functools

import jax
import jax.numpy as jnp
from jax.experimental import pallas as pl
from jax.experimental.pallas import tpu as pltpu


def _mlp_decoder_kernel(zit_ref, zjt_ref, w1t_ref, b1_ref, w23_ref, b23_ref,
                        out_ref, *, apply_sigmoid):
    # Hadamard of the two endpoint embeddings, edges on lanes.  Cast to f32 so
    # the VPU path is valid on v5e even when the slabs are stored as bf16.
    xt = zit_ref[...].astype(jnp.float32) * zjt_ref[...].astype(jnp.float32)  # [C, tE]

    # Linear(in_channels -> hidden) + (Dropout: identity) + LeakyReLU(0.01)
    h = jnp.dot(w1t_ref[...], xt, preferred_element_type=jnp.float32)        # [H, tE] (MXU)
    h = h + b1_ref[...]                                                      # [H, 1] bcast
    h = jnp.where(h > 0, h, 0.01 * h)

    # Folded Linear(hidden -> hidden) -> Linear(hidden -> 1):
    #   logit^T = (w2 @ w3)^T @ h + (b2 @ w3 + b3)  == sum_H(w23 * h) + b23
    # (VPU multiply + XLU sublane reduce; keeps the MXU free.)
    logit = jnp.sum(h * w23_ref[...], axis=0, keepdims=True) + b23_ref[...]  # [1, tE]

    if apply_sigmoid:
        logit = 1.0 / (1.0 + jnp.exp(-logit))   # exp lives on the EUP slot

    out_ref[...] = logit.astype(out_ref.dtype)  # lane-dense [1, tE] store


def mlp_decoder(z, edge_index, params, *, sigmoid=True, tile_e=8192,
                storage_dtype=jnp.float32):
    """JAX wrapper reproducing MLPDecoder.forward(z, edge_index, sigmoid) (eval mode)."""
    w1, b1, w2, b2, w3, b3 = params
    C = z.shape[1]
    H = w1.shape[1]
    E = edge_index.shape[1]

    # ---- wrapper-side algebra (valid in eval/inference mode only) ----------
    w23 = (w2 @ w3).reshape(H, 1).astype(jnp.float32)          # [H, 1]
    b23 = (b2 @ w3 + b3).reshape(1, 1).astype(jnp.float32)     # [1, 1]
    w1t = w1.T.astype(jnp.float32)                             # [H, C]
    b1c = b1.reshape(H, 1).astype(jnp.float32)                 # [H, 1]

    # ---- glue: gather endpoint embeddings, transposed to edges-on-lanes ----
    # TODO(synk): for z small enough to sit resident in VMEM, move this gather
    # into the kernel (resident z + per-tile edge-id slabs) to cut HBM traffic
    # from ~4*E*C*4 bytes to ~N*C*4 + 2*E*4 bytes.
    zit = z.T[:, edge_index[0]]                                # [C, E]
    zjt = z.T[:, edge_index[1]]                                # [C, E]

    # ---- tiling: lane-aligned tiles, cdiv grid, tail padding ---------------
    assert tile_e % 128 == 0, "tile_e must be a multiple of 128 (lane width)"
    tile_e = min(tile_e, -(-E // 128) * 128)
    e_pad = -(-E // tile_e) * tile_e
    if e_pad != E:
        zit = jnp.pad(zit, ((0, 0), (0, e_pad - E)))
        zjt = jnp.pad(zjt, ((0, 0), (0, e_pad - E)))
    zit = zit.astype(storage_dtype)
    zjt = zjt.astype(storage_dtype)

    grid = (e_pad // tile_e,)
    kernel = functools.partial(_mlp_decoder_kernel, apply_sigmoid=sigmoid)

    out = pl.pallas_call(
        kernel,
        out_shape=jax.ShapeDtypeStruct((1, e_pad), jnp.float32),
        grid_spec=pltpu.PrefetchScalarGridSpec(
            num_scalar_prefetch=0,
            grid=grid,
            in_specs=[
                pl.BlockSpec((C, tile_e), lambda i: (0, i)),   # z_i^T tile
                pl.BlockSpec((C, tile_e), lambda i: (0, i)),   # z_j^T tile
                pl.BlockSpec((H, C), lambda i: (0, 0)),        # w1^T   (resident)
                pl.BlockSpec((H, 1), lambda i: (0, 0)),        # b1
                pl.BlockSpec((H, 1), lambda i: (0, 0)),        # w2 @ w3
                pl.BlockSpec((1, 1), lambda i: (0, 0)),        # b2 @ w3 + b3
            ],
            out_specs=pl.BlockSpec((1, tile_e), lambda i: (0, i)),
        ),
        compiler_params=pltpu.CompilerParams(
            dimension_semantics=("parallel",),          # v7x: spread over both TCs
            vmem_limit_bytes=32 * 1024 * 1024),         # v5e default is only 16 MiB
    )(zit, zjt, w1t, b1c, w23, b23)

    value = out[0, :E]                                  # drop pad, .squeeze() -> [E]
    return value                                        # sigmoid (if any) applied in-kernel


def _init_linear(key, fan_in, fan_out):
    """Deterministic init mimicking torch.nn.Linear default (U[-1/sqrt(fi), 1/sqrt(fi)])."""
    kw, kb = jax.random.split(key)
    bound = 1.0 / jnp.sqrt(fan_in)
    # Stored as [fan_in, fan_out] so the reference does x @ W directly.
    w = jax.random.uniform(kw, (fan_in, fan_out), jnp.float32, -bound, bound)
    b = jax.random.uniform(kb, (fan_out,), jnp.float32, -bound, bound)
    return w, b


def _reference(z, edge_index, params, *, sigmoid=True):
    """Pure-JAX reference of the PyTorch forward (eval mode)."""
    w1, b1, w2, b2, w3, b3 = params
    x = z[edge_index[0]] * z[edge_index[1]]
    h = x @ w1 + b1
    h = jnp.where(h > 0, h, 0.01 * h)
    h = h @ w2 + b2
    v = (h @ w3 + b3).squeeze()
    return jax.nn.sigmoid(v) if sigmoid else v


if __name__ == "__main__":
    key = jax.random.PRNGKey(0)
    k_z, k_e, k1, k2, k3 = jax.random.split(key, 5)

    # Small synthetic problem: 64 nodes, 16-dim embeddings, hidden=32,
    # 1000 edges (not a multiple of the tile -> exercises tail padding).
    N, C, H, E = 64, 16, 32, 1000

    z = jax.random.normal(k_z, (N, C), jnp.float32)
    edge_index = jax.random.randint(k_e, (2, E), 0, N, jnp.int32)

    params = (*_init_linear(k1, C, H),
              *_init_linear(k2, H, H),
              *_init_linear(k3, H, 1))

    # f32, sigmoid path (tile_e=256 -> 4-tile grid, tests the pipeline + pad).
    out = mlp_decoder(z, edge_index, params, sigmoid=True, tile_e=256)
    out = jax.block_until_ready(out)
    ref = _reference(z, edge_index, params, sigmoid=True)
    assert out.shape == (E,)
    assert jnp.allclose(out, ref, atol=1e-4, rtol=1e-4), "sigmoid path mismatch"

    # f32, logits path (sigmoid=False -> raw logit straight from the kernel),
    # default (large) tile -> single-tile grid path.
    logits = mlp_decoder(z, edge_index, params, sigmoid=False)
    logits = jax.block_until_ready(logits)
    ref_logits = _reference(z, edge_index, params, sigmoid=False)
    assert jnp.allclose(logits, ref_logits, atol=1e-4, rtol=1e-4), "logit path mismatch"

    # bf16 storage for the HBM-dominant z_i / z_j slabs (compute stays f32).
    out_bf16 = mlp_decoder(z, edge_index, params, sigmoid=True, tile_e=256,
                           storage_dtype=jnp.bfloat16)
    out_bf16 = jax.block_until_ready(out_bf16)
    z_rt = z.astype(jnp.bfloat16).astype(jnp.float32)   # same rounding the kernel sees
    ref_bf16 = _reference(z_rt, edge_index, params, sigmoid=True)
    assert jnp.allclose(out_bf16, ref_bf16, atol=1e-3, rtol=1e-3), "bf16 path mismatch"

    print("KERNEL_OK")
</pallas_src>

<mosaic_0001>
module attributes {stable_mosaic.version = 11 : i64} {
  func.func @_mlp_decoder_kernel(%arg0: i32, %arg1: memref<16x256xf32, #tpu.memory_space<vmem>>, %arg2: memref<16x256xf32, #tpu.memory_space<vmem>>, %arg3: memref<32x16xf32, #tpu.memory_space<vmem>>, %arg4: memref<32x1xf32, #tpu.memory_space<vmem>>, %arg5: memref<32x1xf32, #tpu.memory_space<vmem>>, %arg6: memref<1x1xf32, #tpu.memory_space<vmem>>, %arg7: memref<1x256xf32, #tpu.memory_space<vmem>>) attributes {dimension_semantics = [#tpu.dimension_semantics<parallel>], iteration_bounds = array<i64: 4>, scalar_prefetch = 0 : i64, scratch_operands = 0 : i64, tpu.core_type = #tpu.core_type<tc>, window_params = [{transform_indices = @transform_0, window_bounds = array<i64: 16, 256>}, {transform_indices = @transform_1, window_bounds = array<i64: 16, 256>}, {pipeline_mode = #tpu.pipeline_mode<synchronous>, transform_indices = @transform_2, window_bounds = array<i64: 32, 16>}, {pipeline_mode = #tpu.pipeline_mode<synchronous>, transform_indices = @transform_3, window_bounds = array<i64: 32, 1>}, {pipeline_mode = #tpu.pipeline_mode<synchronous>, transform_indices = @transform_4, window_bounds = array<i64: 32, 1>}, {pipeline_mode = #tpu.pipeline_mode<synchronous>, transform_indices = @transform_5, window_bounds = array<i64: 1, 1>}, {transform_indices = @transform_6, window_bounds = array<i64: 1, 256>}]} {
    %c0 = arith.constant 0 : index
    %c0_0 = arith.constant 0 : index
    %0 = vector.load %arg1[%c0, %c0_0] : memref<16x256xf32, #tpu.memory_space<vmem>>, vector<16x256xf32>
    %c0_1 = arith.constant 0 : index
    %c0_2 = arith.constant 0 : index
    %1 = vector.load %arg2[%c0_1, %c0_2] : memref<16x256xf32, #tpu.memory_space<vmem>>, vector<16x256xf32>
    %2 = arith.mulf %0, %1 : vector<16x256xf32>
    %c0_3 = arith.constant 0 : index
    %c0_4 = arith.constant 0 : index
    %3 = vector.load %arg3[%c0_3, %c0_4] : memref<32x16xf32, #tpu.memory_space<vmem>>, vector<32x16xf32>
    %cst = arith.constant dense<0.000000e+00> : vector<32x256xf32>
    %4 = tpu.matmul %3, %2, %cst {dimension_numbers = #tpu.dot_dimension_numbers<[1], [0], [0], [1], [0, 0, 1, 1], [], []>} : vector<32x16xf32>, vector<16x256xf32>, vector<32x256xf32> -> vector<32x256xf32>
    %c0_5 = arith.constant 0 : index
    %c0_6 = arith.constant 0 : index
    %5 = vector.load %arg4[%c0_5, %c0_6] : memref<32x1xf32, #tpu.memory_space<vmem>>, vector<32x1xf32>
    %6 = vector.broadcast %5 : vector<32x1xf32> to vector<32x256xf32>
    %7 = arith.addf %4, %6 : vector<32x256xf32>
    %cst_7 = arith.constant 0.000000e+00 : f32
    %8 = vector.broadcast %cst_7 : f32 to vector<32x256xf32>
    %9 = arith.cmpf ogt, %7, %8 : vector<32x256xf32>
    %cst_8 = arith.constant 0.00999999977 : f32
    %10 = vector.broadcast %cst_8 : f32 to vector<32x256xf32>
    %11 = arith.mulf %10, %7 : vector<32x256xf32>
    %12 = arith.select %9, %7, %11 : vector<32x256xi1>, vector<32x256xf32>
    %c0_9 = arith.constant 0 : index
    %c0_10 = arith.constant 0 : index
    %13 = vector.load %arg5[%c0_9, %c0_10] : memref<32x1xf32, #tpu.memory_space<vmem>>, vector<32x1xf32>
    %14 = vector.broadcast %13 : vector<32x1xf32> to vector<32x256xf32>
    %15 = arith.mulf %12, %14 : vector<32x256xf32>
    %cst_11 = arith.constant dense<0.000000e+00> : vector<256xf32>
    %16 = vector.multi_reduction <add>, %15, %cst_11 [0] : vector<32x256xf32> to vector<256xf32>
    %17 = vector.shape_cast %16 : vector<256xf32> to vector<1x256xf32>
    %c0_12 = arith.constant 0 : index
    %c0_13 = arith.constant 0 : index
    %18 = vector.load %arg6[%c0_12, %c0_13] : memref<1x1xf32, #tpu.memory_space<vmem>>, vector<1x1xf32>
    %19 = vector.broadcast %18 : vector<1x1xf32> to vector<1x256xf32>
    %20 = arith.addf %17, %19 : vector<1x256xf32>
    %cst_14 = arith.constant 0.000000e+00 : f32
    %21 = vector.broadcast %cst_14 : f32 to vector<1x256xf32>
    %22 = arith.subf %21, %20 : vector<1x256xf32>
    %23 = math.exp %22 : vector<1x256xf32>
    %cst_15 = arith.constant 1.000000e+00 : f32
    %24 = vector.broadcast %cst_15 : f32 to vector<1x256xf32>
    %25 = arith.addf %24, %23 : vector<1x256xf32>
    %cst_16 = arith.constant 1.000000e+00 : f32
    %26 = vector.broadcast %cst_16 : f32 to vector<1x256xf32>
    %27 = arith.divf %26, %25 : vector<1x256xf32>
    %c0_17 = arith.constant 0 : index
    %c0_18 = arith.constant 0 : index
    %28 = vector.load %arg7[%c0_17, %c0_18] : memref<1x256xf32, #tpu.memory_space<vmem>>, vector<1x256xf32>
    tpu.vector_store %arg7[%c0_17, %c0_18], %27 {strides = array<i32>} : memref<1x256xf32, #tpu.memory_space<vmem>>, vector<1x256xf32>,
    return
  }
  func.func @transform_0(%arg0: i32) -> (i32, i32) {
    %c0_i32 = arith.constant 0 : i32
    %c0_i32_0 = arith.constant 0 : i32
    return %c0_i32, %arg0 : i32, i32
  }
  func.func @transform_1(%arg0: i32) -> (i32, i32) {
    %c0_i32 = arith.constant 0 : i32
    %c0_i32_0 = arith.constant 0 : i32
    return %c0_i32, %arg0 : i32, i32
  }
  func.func @transform_2(%arg0: i32) -> (i32, i32) {
    %c0_i32 = arith.constant 0 : i32
    %c0_i32_0 = arith.constant 0 : i32
    %c0_i32_1 = arith.constant 0 : i32
    return %c0_i32, %c0_i32_0 : i32, i32
  }
  func.func @transform_3(%arg0: i32) -> (i32, i32) {
    %c0_i32 = arith.constant 0 : i32
    %c0_i32_0 = arith.constant 0 : i32
    %c0_i32_1 = arith.constant 0 : i32
    return %c0_i32, %c0_i32_0 : i32, i32
  }
  func.func @transform_4(%arg0: i32) -> (i32, i32) {
    %c0_i32 = arith.constant 0 : i32
    %c0_i32_0 = arith.constant 0 : i32
    %c0_i32_1 = arith.constant 0 : i32
    return %c0_i32, %c0_i32_0 : i32, i32
  }
  func.func @transform_5(%arg0: i32) -> (i32, i32) {
    %c0_i32 = arith.constant 0 : i32
    %c0_i32_0 = arith.constant 0 : i32
    %c0_i32_1 = arith.constant 0 : i32
    return %c0_i32, %c0_i32_0 : i32, i32
  }
  func.func @transform_6(%arg0: i32) -> (i32, i32) {
    %c0_i32 = arith.constant 0 : i32
    %c0_i32_0 = arith.constant 0 : i32
    return %c0_i32, %arg0 : i32, i32
  }
}

</mosaic_0001>

<llo_original>
// kernel: tpu_custom_call.1
$region0: #{tpu_custom_call.1}
  #allocation0 [shape = 'u32[]', space=smem, size = 0x4, offset = 0x4, fixed_abs, tag = 'smem constant byte address 0x4 - core index']
  #allocation1 [shape = 'u32[72,128]{1,0:T(1,128)}', space=vmem, size = 0x9000, scoped, tag = 'internal scratch']
  #allocation2 [shape = 'f32[1,1]{1,0:T(1,128)S(1)}', space=vmem, size = 0x200, scoped, tag = 'scoped memory for tpu_custom_call.1']
  %s0 = inlined_call_operand.hbm [shape: f32[16,1024], index: 0, kind: input, shape index: {}]
  %s1 = inlined_call_operand.hbm [shape: f32[16,1024], index: 1, kind: input, shape index: {}]
  %s2 = inlined_call_operand.vmem [shape: f32[32,16], index: 2, kind: input, shape index: {}]
  %s3 = inlined_call_operand.vmem [shape: f32[32,1], index: 3, kind: input, shape index: {}]
  %s4 = inlined_call_operand.vmem [shape: f32[32,1], index: 4, kind: input, shape index: {}]
  %s5 = inlined_call_operand.<no memory space> [shape: f32[1,1], index: 5, kind: input, shape index: {}]
  %s6 = inlined_call_operand.hbm [shape: f32[1,1024], index: 6, kind: output, shape index: {}]
  %s7 = sld [smem:[#allocation0]]
  $region65: #{tpu_custom_call.1} parent=0
    _
  %s9 = ssub.s32 1, %s7
  %s10 = scalar_select 0, %s9, %s7
  %v11 = vstv %s5
  %12 = vst [vmem:[#allocation2] sm:$0x1] %v11
  $region1: #{tpu_custom_call.1} parent=0
    #allocation3 [shape = 'u8[32768]{0}', space=vmem, size = 0x8000, scoped, tag = 'input window, operand 0']
    #allocation4 [shape = 's32[2]{0}', space=sflag, size = 0x8, scoped, tag = 'scoped memory for tpu_custom_call.1']
    #allocation5 [shape = 's32[2]{0}', space=sflag, size = 0x8, scoped, tag = 'scoped memory for tpu_custom_call.1']
    #allocation6 [shape = 'u8[32768]{0}', space=vmem, size = 0x8000, scoped, tag = 'input window, operand 1']
    #allocation7 [shape = 's32[2]{0}', space=sflag, size = 0x8, scoped, tag = 'scoped memory for tpu_custom_call.1']
    #allocation8 [shape = 'u8[2048]{0}', space=vmem, size = 0x800, scoped, tag = 'output window, operand 0']
    %13 = vsyncpa [#allocation4], 0
    %s14 = scalar_lea.sflag [#allocation4], 1
    %15 = vsyncpa %s14, 0
    %16 = vsyncpa [#allocation7], 0
    %s17 = scalar_lea.sflag [#allocation7], 1
    %18 = vsyncpa %s17, 0
    %19 = vsyncpa [#allocation5], 0
    %s20 = scalar_lea.sflag [#allocation5], 1
    %21 = vsyncpa %s20, 0
    loop: start=0, step=1, limit=6
    $region2: #{tpu_custom_call.1} parent=1 // loop_pre_header
      _
    $region3: #{tpu_custom_call.1} parent=1 // loop_header
      %s23 = sphi 0, %s27
      %p24 = scmp.ge.s32.totalorder %s23, 6
      %s33 = sphi 0, %s35
      %s36 = sphi 0, %s33
      %s37 = sphi 0, %s36
      %s53 = sphi 0, %s37
      %s59 = sphi 0, %s61
      %s62 = sphi 0, %s59
      %s63 = sphi 0, %s62
      %s79 = sphi 0, %s63
      %s83 = sphi 0, %s83
      %s85 = sphi 0, %s83
      %s86 = sphi 0, %s85
      %s100 = sphi 0, %s86
      %s104 = sphi 0, %s104
      %s106 = sphi 0, %s104
      %s107 = sphi 0, %s106
      %s121 = sphi 0, %s107
      %s125 = sphi 0, %s125
      %s127 = sphi 0, %s125
      %s128 = sphi 0, %s127
      %s142 = sphi 0, %s128
      %s146 = sphi 0, %s146
      %s148 = sphi 0, %s146
      %s149 = sphi 0, %s148
      %s163 = sphi 0, %s149
      %s169 = sphi 0, %s171
      %s172 = sphi 0, %s169
      %s173 = sphi 0, %s172
      %s189 = sphi 0, %s173
    $region4: #{tpu_custom_call.1} parent=1 // loop_header_branch
      %26 = sbr.rel (%p24) target = $region8
    $region5: #{tpu_custom_call.1} parent=1 // loop_body
      %s28 = ssub.s32 %s23, 1
      %s29 = ssub.s32 %s23, 2
      %s30 = sadd.s32 %s23, 1
      %s31 = ssub.s32 %s23, %s30
      %p32 = scmp.eq.s32.totalorder %s31, 0
      %s34 = sadd.s32 %s33, 1
      %s35 = scalar_select %p32, %s33, %s34
      %p38 = pneg %p32
      %p39 = scmp.eq.s32.totalorder %s23, 3
      %p40 = por %p38, %p39
      %p41 = scmp.ne.s32.totalorder %s33, %s36
      %p42 = scmp.eq.s32.totalorder %s23, 0
      %p43 = por %p41, %p42
      %p44 = scmp.ne.s32.totalorder %s33, %s36
      %p45 = scmp.eq.s32.totalorder %s28, 3
      %p46 = por %p44, %p45
      %p47 = scmp.ne.s32.totalorder %s36, %s37
      %p48 = scmp.eq.s32.totalorder %s28, 0
      %p49 = por %p47, %p48
      %p50 = scmp.ne.s32.totalorder %s36, %s37
      %p51 = scmp.eq.s32.totalorder %s29, 3
      %p52 = por %p50, %p51
      %p54 = scmp.ne.s32.totalorder %s37, %s53
      %p55 = scmp.eq.s32.totalorder %s29, 0
      %p56 = por %p54, %p55
      %s57 = ssub.s32 %s23, %s30
      %p58 = scmp.eq.s32.totalorder %s57, 0
      %s60 = sadd.s32 %s59, 1
      %s61 = scalar_select %p58, %s59, %s60
      %p64 = pneg %p58
      %p65 = scmp.eq.s32.totalorder %s23, 3
      %p66 = por %p64, %p65
      %p67 = scmp.ne.s32.totalorder %s59, %s62
      %p68 = scmp.eq.s32.totalorder %s23, 0
      %p69 = por %p67, %p68
      %p70 = scmp.ne.s32.totalorder %s59, %s62
      %p71 = scmp.eq.s32.totalorder %s28, 3
      %p72 = por %p70, %p71
      %p73 = scmp.ne.s32.totalorder %s62, %s63
      %p74 = scmp.eq.s32.totalorder %s28, 0
      %p75 = por %p73, %p74
      %p76 = scmp.ne.s32.totalorder %s62, %s63
      %p77 = scmp.eq.s32.totalorder %s29, 3
      %p78 = por %p76, %p77
      %p80 = scmp.ne.s32.totalorder %s63, %s79
      %p81 = scmp.eq.s32.totalorder %s29, 0
      %p82 = por %p80, %p81
      %s84 = sadd.s32 %s83, 1
      %p87 = scmp.eq.s32.totalorder %s23, 3
      %p88 = scmp.ne.s32.totalorder %s83, %s85
      %p89 = scmp.eq.s32.totalorder %s23, 0
      %p90 = por %p88, %p89
      %p91 = scmp.ne.s32.totalorder %s83, %s85
      %p92 = scmp.eq.s32.totalorder %s28, 3
      %p93 = por %p91, %p92
      %p94 = scmp.ne.s32.totalorder %s85, %s86
      %p95 = scmp.eq.s32.totalorder %s28, 0
      %p96 = por %p94, %p95
      %p97 = scmp.ne.s32.totalorder %s85, %s86
      %p98 = scmp.eq.s32.totalorder %s29, 3
      %p99 = por %p97, %p98
      %p101 = scmp.ne.s32.totalorder %s86, %s100
      %p102 = scmp.eq.s32.totalorder %s29, 0
      %p103 = por %p101, %p102
      %s105 = sadd.s32 %s104, 1
      %p108 = scmp.eq.s32.totalorder %s23, 3
      %p109 = scmp.ne.s32.totalorder %s104, %s106
      %p110 = scmp.eq.s32.totalorder %s23, 0
      %p111 = por %p109, %p110
      %p112 = scmp.ne.s32.totalorder %s104, %s106
      %p113 = scmp.eq.s32.totalorder %s28, 3
      %p114 = por %p112, %p113
      %p115 = scmp.ne.s32.totalorder %s106, %s107
      %p116 = scmp.eq.s32.totalorder %s28, 0
      %p117 = por %p115, %p116
      %p118 = scmp.ne.s32.totalorder %s106, %s107
      %p119 = scmp.eq.s32.totalorder %s29, 3
      %p120 = por %p118, %p119
      %p122 = scmp.ne.s32.totalorder %s107, %s121
      %p123 = scmp.eq.s32.totalorder %s29, 0
      %p124 = por %p122, %p123
      %s126 = sadd.s32 %s125, 1
      %p129 = scmp.eq.s32.totalorder %s23, 3
      %p130 = scmp.ne.s32.totalorder %s125, %s127
      %p131 = scmp.eq.s32.totalorder %s23, 0
      %p132 = por %p130, %p131
      %p133 = scmp.ne.s32.totalorder %s125, %s127
      %p134 = scmp.eq.s32.totalorder %s28, 3
      %p135 = por %p133, %p134
      %p136 = scmp.ne.s32.totalorder %s127, %s128
      %p137 = scmp.eq.s32.totalorder %s28, 0
      %p138 = por %p136, %p137
      %p139 = scmp.ne.s32.totalorder %s127, %s128
      %p140 = scmp.eq.s32.totalorder %s29, 3
      %p141 = por %p139, %p140
      %p143 = scmp.ne.s32.totalorder %s128, %s142
      %p144 = scmp.eq.s32.totalorder %s29, 0
      %p145 = por %p143, %p144
      %s147 = sadd.s32 %s146, 1
      %p150 = scmp.eq.s32.totalorder %s23, 3
      %p151 = scmp.ne.s32.totalorder %s146, %s148
      %p152 = scmp.eq.s32.totalorder %s23, 0
      %p153 = por %p151, %p152
      %p154 = scmp.ne.s32.totalorder %s146, %s148
      %p155 = scmp.eq.s32.totalorder %s28, 3
      %p156 = por %p154, %p155
      %p157 = scmp.ne.s32.totalorder %s148, %s149
      %p158 = scmp.eq.s32.totalorder %s28, 0
      %p159 = por %p157, %p158
      %p160 = scmp.ne.s32.totalorder %s148, %s149
      %p161 = scmp.eq.s32.totalorder %s29, 3
      %p162 = por %p160, %p161
      %p164 = scmp.ne.s32.totalorder %s149, %s163
      %p165 = scmp.eq.s32.totalorder %s29, 0
      %p166 = por %p164, %p165
      %s167 = ssub.s32 %s23, %s30
      %p168 = scmp.eq.s32.totalorder %s167, 0
      %s170 = sadd.s32 %s169, 1
      %s171 = scalar_select %p168, %s169, %s170
      %p174 = pneg %p168
      %p175 = scmp.eq.s32.totalorder %s23, 3
      %p176 = por %p174, %p175
      %p177 = scmp.ne.s32.totalorder %s169, %s172
      %p178 = scmp.eq.s32.totalorder %s23, 0
      %p179 = por %p177, %p178
      %p180 = scmp.ne.s32.totalorder %s169, %s172
      %p181 = scmp.eq.s32.totalorder %s28, 3
      %p182 = por %p180, %p181
      %p183 = scmp.ne.s32.totalorder %s172, %s173
      %p184 = scmp.eq.s32.totalorder %s28, 0
      %p185 = por %p183, %p184
      %p186 = scmp.ne.s32.totalorder %s172, %s173
      %p187 = scmp.eq.s32.totalorder %s29, 3
      %p188 = por %p186, %p187
      %p190 = scmp.ne.s32.totalorder %s173, %s189
      %p191 = scmp.eq.s32.totalorder %s29, 0
      %p192 = por %p190, %p191
      %p193 = scmp.le.s32.totalorder 1, %s23
      %p194 = scmp.lt.s32.totalorder %s23, 5
      %p195 = pnand %p193, %p194
      %p196 = pneg %p195
      // Predicated region
      $region9: #{tpu_custom_call.1} parent=5 // pred_check
        _
      $region10: #{tpu_custom_call.1} parent=5 // pred_check_branch
        %198 = sbr.rel (%p195) target = $region12
      $region11: #{tpu_custom_call.1} parent=5 // pred_region
        %s199 = ssub.s32 %s23, 1
        // Predicated region
        $region13: #{tpu_custom_call.1} parent=11 // pred_check
          %p200 = pneg %p96
        $region14: #{tpu_custom_call.1} parent=11 // pred_check_branch
          %202 = sbr.rel (%p200) target = $region16
        $region15: #{tpu_custom_call.1} parent=11 // pred_region
          _
        $region16: #{tpu_custom_call.1} parent=11 // pred_fallthru
          _
        // Predicated region
        $region17: #{tpu_custom_call.1} parent=11 // pred_check
          %p203 = pneg %p117
        $region18: #{tpu_custom_call.1} parent=11 // pred_check_branch
          %205 = sbr.rel (%p203) target = $region20
        $region19: #{tpu_custom_call.1} parent=11 // pred_region
          _
        $region20: #{tpu_custom_call.1} parent=11 // pred_fallthru
          _
        // Predicated region
        $region21: #{tpu_custom_call.1} parent=11 // pred_check
          %p206 = pneg %p138
        $region22: #{tpu_custom_call.1} parent=11 // pred_check_branch
          %208 = sbr.rel (%p206) target = $region24
        $region23: #{tpu_custom_call.1} parent=11 // pred_region
          _
        $region24: #{tpu_custom_call.1} parent=11 // pred_fallthru
          _
        // Predicated region
        $region25: #{tpu_custom_call.1} parent=11 // pred_check
          %p209 = pneg %p159
        $region26: #{tpu_custom_call.1} parent=11 // pred_check_branch
          %211 = sbr.rel (%p209) target = $region28
        $region27: #{tpu_custom_call.1} parent=11 // pred_region
          _
        $region28: #{tpu_custom_call.1} parent=11 // pred_fallthru
          _
      $region12: #{tpu_custom_call.1} parent=5 // pred_fallthru
        _
      %p212 = scmp.lt.s32.totalorder %s23, 4
      // Predicated region
      $region29: #{tpu_custom_call.1} parent=5 // pred_check
        %p213 = pneg %p212
      $region30: #{tpu_custom_call.1} parent=5 // pred_check_branch
        %215 = sbr.rel (%p213) target = $region32
      $region31: #{tpu_custom_call.1} parent=5 // pred_region
        // Predicated region
        $region33: #{tpu_custom_call.1} parent=31 // pred_check
          %p216 = pneg %p43
        $region34: #{tpu_custom_call.1} parent=31 // pred_check_branch
          %218 = sbr.rel (%p216) target = $region36
        $region35: #{tpu_custom_call.1} parent=31 // pred_region
          %s219 = sand.u32 %s33, 1
          %s220 = scalar_lea.sflag [#allocation4], %s219
          %s221 = sand.u32 %s33, 1
          %s222 = smul.addr %s221, 32
          %s223 = scalar_lea.vmem [#allocation3], %s222
          %s224 = smul.u32 2, %s23
          %226 = vsyncadd %s220, 0
          %s227 = smul.addr %s224, 8
          %s228 = scalar_lea.hbm %s0, %s227
          %s229 = sshll.u32 %s228, 4
          %s230 = int_to_ptr.hbm [resolvable:$true] %s229
          %s231 = sshll.u32 %s223, 4
          %s232 = int_to_ptr.vmem [resolvable:$true] %s231
          %237 = dma.hbm_to_vmem [thread:$0]  %s230, 512, %s232, %s220, 1024, 256, 16
        $region36: #{tpu_custom_call.1} parent=31 // pred_fallthru
          _
        // Predicated region
        $region37: #{tpu_custom_call.1} parent=31 // pred_check
          %p238 = pneg %p69
        $region38: #{tpu_custom_call.1} parent=31 // pred_check_branch
          %240 = sbr.rel (%p238) target = $region40
        $region39: #{tpu_custom_call.1} parent=31 // pred_region
          %s241 = sand.u32 %s59, 1
          %s242 = scalar_lea.sflag [#allocation7], %s241
          %s243 = sand.u32 %s59, 1
          %s244 = smul.addr %s243, 32
          %s245 = scalar_lea.vmem [#allocation6], %s244
          %s246 = smul.u32 2, %s23
          %248 = vsyncadd %s242, 0
          %s249 = smul.addr %s246, 8
          %s250 = scalar_lea.hbm %s1, %s249
          %s251 = sshll.u32 %s250, 4
          %s252 = int_to_ptr.hbm [resolvable:$true] %s251
          %s253 = sshll.u32 %s245, 4
          %s254 = int_to_ptr.vmem [resolvable:$true] %s253
          %259 = dma.hbm_to_vmem [thread:$0]  %s252, 512, %s254, %s242, 1024, 256, 16
        $region40: #{tpu_custom_call.1} parent=31 // pred_fallthru
          _
      $region32: #{tpu_custom_call.1} parent=5 // pred_fallthru
        _
      %p260 = scmp.le.s32.totalorder 1, %s23
      %p261 = scmp.lt.s32.totalorder %s23, 5
      %p262 = pnand %p260, %p261
      %p263 = pneg %p262
      // Predicated region
      $region41: #{tpu_custom_call.1} parent=5 // pred_check
        _
      $region42: #{tpu_custom_call.1} parent=5 // pred_check_branch
        %265 = sbr.rel (%p262) target = $region44
      $region43: #{tpu_custom_call.1} parent=5 // pred_region
        %s266 = ssub.s32 %s23, 1
        %s267 = sand.u32 %s36, 1
        %s268 = scalar_lea.sflag [#allocation4], %s267
        %s269 = sand.u32 %s36, 1
        %s270 = smul.addr %s269, 32
        %s271 = scalar_lea.vmem [#allocation3], %s270
        // Predicated region
        $region45: #{tpu_custom_call.1} parent=43 // pred_check
          %p272 = pneg %p49
        $region46: #{tpu_custom_call.1} parent=43 // pred_check_branch
          %274 = sbr.rel (%p272) target = $region48
        $region47: #{tpu_custom_call.1} parent=43 // pred_region
          %276 = dma.done %s268, 512
        $region48: #{tpu_custom_call.1} parent=43 // pred_fallthru
          _
        %s277 = sand.u32 %s62, 1
        %s278 = scalar_lea.sflag [#allocation7], %s277
        %s279 = sand.u32 %s62, 1
        %s280 = smul.addr %s279, 32
        %s281 = scalar_lea.vmem [#allocation6], %s280
        // Predicated region
        $region49: #{tpu_custom_call.1} parent=43 // pred_check
          %p282 = pneg %p75
        $region50: #{tpu_custom_call.1} parent=43 // pred_check_branch
          %284 = sbr.rel (%p282) target = $region52
        $region51: #{tpu_custom_call.1} parent=43 // pred_region
          %286 = dma.done %s278, 512
        $region52: #{tpu_custom_call.1} parent=43 // pred_fallthru
          _
        %s287 = sand.u32 %s36, 1
        %s288 = scalar_lea.sflag [#allocation4], %s287
        %s289 = sand.u32 %s36, 1
        %s290 = smul.addr %s289, 32
        %s291 = scalar_lea.vmem [#allocation3], %s290
        %p292 = pneg %p49
        %p293 = pneg %p46
        %s294 = sand.u32 %s62, 1
        %s295 = scalar_lea.sflag [#allocation7], %s294
        %s296 = sand.u32 %s62, 1
        %s297 = smul.addr %s296, 32
        %s298 = scalar_lea.vmem [#allocation6], %s297
        %p299 = pneg %p75
        %p300 = pneg %p72
        %p301 = pneg %p96
        %p302 = pneg %p93
        %p303 = pneg %p117
        %p304 = pneg %p114
        %p305 = pneg %p138
        %p306 = pneg %p135
        %p307 = pneg %p159
        %p308 = pneg %p156
        %p309 = pneg %p185
        %p310 = pneg %p182
        %s311 = sand.u32 %s172, 1
        %s312 = scalar_lea.sflag [#allocation5], %s311
        %s313 = sand.u32 %s172, 1
        %s314 = smul.addr %s313, 2
        %s315 = scalar_lea.vmem [#allocation8], %s314
        %s316 = smul.u32 2, %s28
        %s317 = smul.u32 2, %s28
        %s318 = smul.u32 2, %s28
        %v319 = vld [vmem:[%s271] sm:$0xff]
        %v320 = vld [vmem:[%s271 + $0x8] sm:$0xff]
        %v321 = vld [vmem:[%s271 + $0x10] sm:$0xff]
        %v322 = vld [vmem:[%s271 + $0x18] sm:$0xff]
        %v323 = vld [vmem:[%s281] sm:$0xff]
        %v324 = vld [vmem:[%s281 + $0x8] sm:$0xff]
        %v325 = vld [vmem:[%s281 + $0x10] sm:$0xff]
        %v326 = vld [vmem:[%s281 + $0x18] sm:$0xff]
        %v327 = vmul.f32 %v319, %v323
        %v328 = vmul.f32 %v320, %v324
        %v329 = vmul.f32 %v321, %v325
        %v330 = vmul.f32 %v322, %v326
        %v331 = vld [vmem:[%s2] sm:$0xff]
        %v332 = vld [vmem:[%s2 + $0x8] sm:$0xff]
        %v333 = vld [vmem:[%s2 + $0x10] sm:$0xff]
        %v334 = vld [vmem:[%s2 + $0x18] sm:$0xff]
        %v335 = vld [vmem:[%s3] sm:$0xff]
        %v336 = vld [vmem:[%s3 + $0x8] sm:$0xff]
        %v337 = vld [vmem:[%s3 + $0x10] sm:$0xff]
        %v338 = vld [vmem:[%s3 + $0x18] sm:$0xff]
        %340 = vset.pattern.permute.xlu0 0
        %341 = vperm.xlu0 %340, %v335
        %v342 = vpop.permute.xlu0 %341
        %345 = vset.pattern.permute.xlu0 0
        %346 = vperm.xlu0 %345, %v336
        %v347 = vpop.permute.xlu0 %346
        %350 = vset.pattern.permute.xlu0 0
        %351 = vperm.xlu0 %350, %v337
        %v352 = vpop.permute.xlu0 %351
        %355 = vset.pattern.permute.xlu0 0
        %356 = vperm.xlu0 %355, %v338
        %v357 = vpop.permute.xlu0 %356
        %vm359 = vcmask 130048
        %v361 = vsel %vm359, %v331, 0
        %v364 = vsel %vm359, %v332, 0
        %v367 = vsel %vm359, %v333, 0
        %v370 = vsel %vm359, %v334, 0
        %372 = vmatpush.msra.mxu0 0.0
        %373 = vmatpush.msra.mxu0 0.0
        %374 = vmatpush.msra.mxu0 0.0
        %375 = vmatpush.msra.mxu0 0.0
        %376 = vmatpush.msra.mxu0 0.0
        %377 = vmatpush.msra.mxu0 0.0
        %378 = vmatpush.msra.mxu0 0.0
        %379 = vmatpush.msra.mxu0 0.0
        %380 = vmatpush.msra.mxu0 0.0
        %381 = vmatpush.msra.mxu0 0.0
        %382 = vmatpush.msra.mxu0 0.0
        %383 = vmatpush.msra.mxu0 0.0
        %384 = vmatpush.msra.mxu0 0.0
        %385 = vmatpush.msra.mxu0 0.0
        %386 = vmatpush.msra.mxu0 %v329
        %387 = vmatpush.msra.mxu0 %v327
        %388 = vmatmul.f32.gmra.mxu0 %v361
        %v389 = vpop.f32.mrf.mxu0
        %v390 = vadd.f32 %v342, %v389
        %391 = vmatmul.f32.gmra.mxu0 %v364
        %v392 = vpop.f32.mrf.mxu0
        %v393 = vadd.f32 %v347, %v392
        %394 = vmatmul.f32.gmra.mxu0 %v367
        %v395 = vpop.f32.mrf.mxu0
        %v396 = vadd.f32 %v352, %v395
        %397 = vmatmul.f32.gmra.mxu0 %v370
        %v398 = vpop.f32.mrf.mxu0
        %v399 = vadd.f32 %v357, %v398
        %400 = vdwg.mxu0
        %401 = vmatpush.msra.mxu0 0.0
        %402 = vmatpush.msra.mxu0 0.0
        %403 = vmatpush.msra.mxu0 0.0
        %404 = vmatpush.msra.mxu0 0.0
        %405 = vmatpush.msra.mxu0 0.0
        %406 = vmatpush.msra.mxu0 0.0
        %407 = vmatpush.msra.mxu0 0.0
        %408 = vmatpush.msra.mxu0 0.0
        %409 = vmatpush.msra.mxu0 0.0
        %410 = vmatpush.msra.mxu0 0.0
        %411 = vmatpush.msra.mxu0 0.0
        %412 = vmatpush.msra.mxu0 0.0
        %413 = vmatpush.msra.mxu0 0.0
        %414 = vmatpush.msra.mxu0 0.0
        %415 = vmatpush.msra.mxu0 %v330
        %416 = vmatpush.msra.mxu0 %v328
        %417 = vmatmul.f32.gmra.mxu0 %v361
        %v418 = vpop.f32.mrf.mxu0
        %v419 = vadd.f32 %v342, %v418
        %420 = vmatmul.f32.gmra.mxu0 %v364
        %v421 = vpop.f32.mrf.mxu0
        %v422 = vadd.f32 %v347, %v421
        %423 = vmatmul.f32.gmra.mxu0 %v367
        %v424 = vpop.f32.mrf.mxu0
        %v425 = vadd.f32 %v352, %v424
        %426 = vmatmul.f32.gmra.mxu0 %v370
        %v427 = vpop.f32.mrf.mxu0
        %v428 = vadd.f32 %v357, %v427
        %429 = vdwg.mxu0
        %vm430 = vcmp.gt.f32.partialorder %v390, 0.0
        %vm431 = vcmp.gt.f32.partialorder %v419, 0.0
        %vm432 = vcmp.gt.f32.partialorder %v393, 0.0
        %vm433 = vcmp.gt.f32.partialorder %v422, 0.0
        %vm434 = vcmp.gt.f32.partialorder %v396, 0.0
        %vm435 = vcmp.gt.f32.partialorder %v425, 0.0
        %vm436 = vcmp.gt.f32.partialorder %v399, 0.0
        %vm437 = vcmp.gt.f32.partialorder %v428, 0.0
        %v438 = vmul.f32 %v390, 0.01
        %v439 = vmul.f32 %v419, 0.01
        %v440 = vmul.f32 %v393, 0.01
        %v441 = vmul.f32 %v422, 0.01
        %v442 = vmul.f32 %v396, 0.01
        %v443 = vmul.f32 %v425, 0.01
        %v444 = vmul.f32 %v399, 0.01
        %v445 = vmul.f32 %v428, 0.01
        %v446 = vsel %vm430, %v390, %v438
        %v447 = vsel %vm431, %v419, %v439
        %v448 = vsel %vm432, %v393, %v440
        %v449 = vsel %vm433, %v422, %v441
        %v450 = vsel %vm434, %v396, %v442
        %v451 = vsel %vm435, %v425, %v443
        %v452 = vsel %vm436, %v399, %v444
        %v453 = vsel %vm437, %v428, %v445
        %v454 = vld [vmem:[%s4] sm:$0xff]
        %v455 = vld [vmem:[%s4 + $0x8] sm:$0xff]
        %v456 = vld [vmem:[%s4 + $0x10] sm:$0xff]
        %v457 = vld [vmem:[%s4 + $0x18] sm:$0xff]
        %459 = vset.pattern.permute.xlu0 0
        %460 = vperm.xlu0 %459, %v454
        %v461 = vpop.permute.xlu0 %460
        %464 = vset.pattern.permute.xlu0 0
        %465 = vperm.xlu0 %464, %v455
        %v466 = vpop.permute.xlu0 %465
        %469 = vset.pattern.permute.xlu0 0
        %470 = vperm.xlu0 %469, %v456
        %v471 = vpop.permute.xlu0 %470
        %474 = vset.pattern.permute.xlu0 0
        %475 = vperm.xlu0 %474, %v457
        %v476 = vpop.permute.xlu0 %475
        %v478 = vmul.f32 %v446, %v461
        %v479 = vmul.f32 %v447, %v461
        %v480 = vmul.f32 %v448, %v466
        %v481 = vmul.f32 %v449, %v466
        %v482 = vmul.f32 %v450, %v471
        %v483 = vmul.f32 %v451, %v471
        %v484 = vmul.f32 %v452, %v476
        %v485 = vmul.f32 %v453, %v476
        %v486 = vadd.f32 %v478, %v480
        %v487 = vadd.f32 %v486, %v482
        %v488 = vadd.f32 %v487, %v484
        %v489 = vrot.slane %v488, 4
        %v490 = vadd.f32 %v488, %v489
        %v491 = vrot.slane %v490, 2
        %v492 = vadd.f32 %v490, %v491
        %v493 = vrot.slane %v492, 1
        %v494 = vadd.f32 %v492, %v493
        %v495 = vadd.f32 %v479, %v481
        %v496 = vadd.f32 %v495, %v483
        %v497 = vadd.f32 %v496, %v485
        %v498 = vrot.slane %v497, 4
        %v499 = vadd.f32 %v497, %v498
        %v500 = vrot.slane %v499, 2
        %v501 = vadd.f32 %v499, %v500
        %v502 = vrot.slane %v501, 1
        %v503 = vadd.f32 %v501, %v502
        %v504 = vld [vmem:[#allocation2] sm:$0x1]
        %506 = vset.pattern.permute.xlu0 0
        %507 = vperm.xlu0 %506, %v504
        %v508 = vpop.permute.xlu0 %507
        %v510 = vperm.slane %v508, 0
        %v511 = vadd.f32 %v494, %v510
        %v512 = vadd.f32 %v503, %v510
        %v513 = vsub.f32 0.0, %v511
        %v514 = vsub.f32 0.0, %v512
        %v515 = vmul.f32 %v513, 1.442695
        %v516 = vpow.pop %v515
        %v517 = vmul.f32 %v514, 1.442695
        %v518 = vpow.pop %v517
        %v519 = vadd.f32 %v516, 1.0
        %v520 = vadd.f32 %v518, 1.0
        %v521 = vrcp.pop %v519
        %v522 = vmul.f32 %v519, %v521
        %v523 = vsub.f32 1.0, %v522
        %v524 = vmul.f32 %v521, %v523
        %v525 = vadd.f32 %v521, %v524
        %vm526 = vweird.f32 %v519
        %vm527 = vweird.f32 %v521
        %vm528 = vmor %vm526, %vm527
        %v529 = vsel %vm528, %v521, %v525
        %v530 = vand.u32 2147483647, %v519
        %vm531 = vcmp.eq.f32.partialorder %v530, 8.507059e+37
        %v532 = vand.u32 %v519, 2147483648
        %v533 = vor.u32 1.1754944e-38, %v532
        %v534 = vsel %vm531, %v533, %v529
        %v535 = vmul.f32 1.0, %v534
        %v536 = vrcp.pop %v520
        %v537 = vmul.f32 %v520, %v536
        %v538 = vsub.f32 1.0, %v537
        %v539 = vmul.f32 %v536, %v538
        %v540 = vadd.f32 %v536, %v539
        %vm541 = vweird.f32 %v520
        %vm542 = vweird.f32 %v536
        %vm543 = vmor %vm541, %vm542
        %v544 = vsel %vm543, %v536, %v540
        %v545 = vand.u32 2147483647, %v520
        %vm546 = vcmp.eq.f32.partialorder %v545, 8.507059e+37
        %v547 = vand.u32 %v520, 2147483648
        %v548 = vor.u32 1.1754944e-38, %v547
        %v549 = vsel %vm546, %v548, %v544
        %v550 = vmul.f32 1.0, %v549
        %v553 = vrot.slane %v550, 7
        %vm554 = vcmask 1040384
        %v555 = vsel %vm554, %v535, %v553
        %v557 = vlaneseq
        %vm558 = vcmp.ge.s32.totalorder %v557, 0
        %vm559 = vcmp.lt.s32.totalorder %v557, 256
        %vm560 = vmand %vm558, %vm559
        %561 = vst.msk [vmem:[%s315] sm:$0x3] %vm560, %v555
        %s562 = sand.u32 %s172, 1
        %s563 = scalar_lea.sflag [#allocation5], %s562
        %s564 = sand.u32 %s172, 1
        %s565 = smul.addr %s564, 2
        %s566 = scalar_lea.vmem [#allocation8], %s565
        // Predicated region
        $region53: #{tpu_custom_call.1} parent=43 // pred_check
          %p567 = pneg %p182
        $region54: #{tpu_custom_call.1} parent=43 // pred_check_branch
          %569 = sbr.rel (%p567) target = $region56
        $region55: #{tpu_custom_call.1} parent=43 // pred_region
          %s570 = smul.u32 2, %s28
          %572 = vsyncadd %s563, 0
          %s573 = scalar_lea.hbm %s6, %s570
          %s575 = sshll.u32 %s566, 4
          %s576 = int_to_ptr.vmem [resolvable:$true] %s575
          %s577 = sshll.u32 %s573, 4
          %s578 = int_to_ptr.hbm [resolvable:$true] %s577
          %580 = dma.vmem_to_hbm [thread:$0]  %s576, 32, %s578, %s563
        $region56: #{tpu_custom_call.1} parent=43 // pred_fallthru
          _
      $region44: #{tpu_custom_call.1} parent=5 // pred_fallthru
        _
      %p581 = scmp.le.s32.totalorder 2, %s23
      // Predicated region
      $region57: #{tpu_custom_call.1} parent=5 // pred_check
        %p582 = pneg %p581
      $region58: #{tpu_custom_call.1} parent=5 // pred_check_branch
        %584 = sbr.rel (%p582) target = $region60
      $region59: #{tpu_custom_call.1} parent=5 // pred_region
        %s585 = ssub.s32 %s23, 2
        // Predicated region
        $region61: #{tpu_custom_call.1} parent=59 // pred_check
          %p586 = pneg %p188
        $region62: #{tpu_custom_call.1} parent=59 // pred_check_branch
          %588 = sbr.rel (%p586) target = $region64
        $region63: #{tpu_custom_call.1} parent=59 // pred_region
          %s589 = sand.u32 %s173, 1
          %s590 = scalar_lea.sflag [#allocation5], %s589
          %s591 = sand.u32 %s173, 1
          %s592 = smul.addr %s591, 2
          %s593 = scalar_lea.vmem [#allocation8], %s592
          %595 = dma.done %s590, 32
        $region64: #{tpu_custom_call.1} parent=59 // pred_fallthru
          _
      $region60: #{tpu_custom_call.1} parent=5 // pred_fallthru
        _
    $region6: #{tpu_custom_call.1} parent=1 // loop_footer
      %s27 = sadd.s32 1, %s23
    $region7: #{tpu_custom_call.1} parent=1 // loop_footer_branch
      %22 = sbr.rel target = $region3
    $region8: #{tpu_custom_call.1} parent=1 // loop_exit
      _
    %596 = vsyncpa [#allocation4], 1
    %s597 = scalar_lea.sflag [#allocation4], 1
    %598 = vsyncpa %s597, 1
    %599 = vsyncpa [#allocation7], 1
    %s600 = scalar_lea.sflag [#allocation7], 1
    %601 = vsyncpa %s600, 1
    %602 = vsyncpa [#allocation5], 1
    %s603 = scalar_lea.sflag [#allocation5], 1
    %604 = vsyncpa %s603, 1

</llo_original>
